<compile_context>
chip_gen: v7x
topology: tpu7x:2x2x1
jax: 0.10.0
libtpu: 0.0.40
codegen_flags: <defaults>
</compile_context>

<pallas_src>
import functools
import math

import jax
import jax.numpy as jnp
from jax.experimental import pallas as pl
from jax.experimental.pallas import tpu as pltpu

EMB = 128
NUM_HEADS = 1   # single head -> head_dim == EMB


def mha_kernel(x_ref, wqkv_ref, wo_ref, bqkv_ref, bo_ref, o_ref, *, tb, s):
    e = wo_ref.shape[0]

    # f32 HBM read; cast to bf16 on the VPU (hidden under DMA/MXU slack).
    x = x_ref[...].astype(jnp.bfloat16)                              # (TB*S, E) bf16

    # Fused QKV projection: one MXU op with N=3E; f32 accumulation, f32 bias add.
    qkv = jnp.dot(x, wqkv_ref[...], preferred_element_type=jnp.float32)
    qkv = qkv + bqkv_ref[...]                                        # (TB*S, 3E) f32

    # Lane-aligned slices (offsets are multiples of 128); scale already folded in Wq.
    q = qkv[:, 0 * e:1 * e].reshape(tb, s, e).astype(jnp.bfloat16)
    k = qkv[:, 1 * e:2 * e].reshape(tb, s, e).astype(jnp.bfloat16)
    v = qkv[:, 2 * e:3 * e].reshape(tb, s, e).astype(jnp.bfloat16)

    # Scores: contract q and k on the feature axis (same pattern as the reference
    # flash-attention kernel's einsum 'bqd,bkd->bqk'; no materialized k.T).
    s_mat = jax.lax.dot_general(q, k, (((2,), (2,)), ((0,), (0,))),
                                preferred_element_type=jnp.float32)  # (TB, S, S)

    # Numerically-stable softmax; the divide runs on the EUP slot.
    m = jnp.max(s_mat, axis=-1, keepdims=True)
    p = jnp.exp(s_mat - m)
    row_sum = jnp.sum(p, axis=-1, keepdims=True)

    if s > e:
        # Defer normalization past p@v: broadcast multiply hits TB*S*E elements
        # instead of TB*S*S (S/E fewer VALU ops on the largest tensor).
        attn = jax.lax.dot_general(p.astype(jnp.bfloat16), v,
                                   (((2,), (1,)), ((0,), (0,))),
                                   preferred_element_type=jnp.float32)  # (TB, S, E)
        attn = attn * pl.reciprocal(row_sum, approx=True)
    else:
        p = p * pl.reciprocal(row_sum, approx=True)
        attn = jax.lax.dot_general(p.astype(jnp.bfloat16), v,
                                   (((2,), (1,)), ((0,), (0,))),
                                   preferred_element_type=jnp.float32)  # (TB, S, E)

    # Output projection on the flattened slab -> large-M matmul, lane-dense store.
    out = jnp.dot(attn.reshape(tb * s, e).astype(jnp.bfloat16), wo_ref[...],
                  preferred_element_type=jnp.float32) + bo_ref[...]
    o_ref[...] = out.astype(o_ref.dtype)


def _vmem_limit_bytes():
    """~7/8 of physical VMEM: ~56 MiB on v7x, ~112 MiB on v5e/v6e."""
    try:
        cap = pltpu.get_tpu_info().vmem_capacity_bytes
    except Exception:
        cap = 64 * 1024 * 1024   # conservative fallback valid on all generations
    return int(cap - cap // 8)


def _per_row_vmem_bytes(seq, emb=EMB, out_bytes=4):
    """Rough per-row (row = one token) VMEM footprint of one grid step."""
    return (2 * emb * 4              # x block (f32), double-buffered
            + 2 * emb * out_bytes    # out block, double-buffered
            + 3 * emb * 4            # qkv f32 temp
            + 3 * emb * 2            # q/k/v bf16 copies
            + emb * (4 + 2)          # attn f32 + bf16
            + emb * 4                # projected out f32 temp
            + 2 * seq * 4)           # scores + probs f32


def _pick_batch_tile(batch, seq, vmem_budget, target_rows=1024, out_bytes=4):
    """Largest divisor of `batch` whose (TB*S, E) slab (a) targets 512-1024 MXU rows
    and (b) fits the VMEM budget. Then, if that collapsed the grid to one step,
    split back to >=2 steps (v7x shards the parallel axis across 2 TensorCores)
    only when each half keeps >=128 rows."""
    per_row = _per_row_vmem_bytes(seq, out_bytes=out_bytes)
    max_rows_vmem = max(seq, (vmem_budget - (1 << 20)) // per_row)  # ~1 MiB for weights/misc
    row_cap = min(max(target_rows, seq), max_rows_vmem)
    tb = 1
    for d in range(1, batch + 1):
        if batch % d == 0 and d * seq <= row_cap:
            tb = d
    while batch // tb < 2 and tb % 2 == 0 and (tb // 2) * seq >= 128:
        tb //= 2
    return tb


def fuse_mha_params(params, emb=EMB, num_heads=NUM_HEADS):
    """One-time weight prep: fuse QKV, pre-transpose, fold the 1/sqrt(head_dim)
    scale into Q, and cast to the kernel's dtypes. Call once, reuse per forward."""
    scale = 1.0 / math.sqrt(emb // num_heads)
    wqkv = jnp.concatenate(
        [params["wq"].T * scale, params["wk"].T, params["wv"].T], axis=1)        # (E, 3E)
    bqkv = jnp.concatenate(
        [params["bq"] * scale, params["bk"], params["bv"]]).reshape(1, 3 * emb)  # (1, 3E)
    return {
        "wqkv": wqkv.astype(jnp.bfloat16),
        "bqkv": bqkv.astype(jnp.float32),
        "wo_t": params["wo"].T.astype(jnp.bfloat16),                             # (E, E)
        "bo": params["bo"].reshape(1, emb).astype(jnp.float32),
    }


def multihead_attention(x, fused, out_dtype=None):
    """x: (B, S, E) float32. `fused` comes from fuse_mha_params(). out_dtype
    defaults to x.dtype; pass jnp.bfloat16 to halve writeback if downstream allows."""
    B, S, E = x.shape
    assert E == EMB
    assert S % 8 == 0, "sequence length must be a multiple of 8 (pad if needed)"

    out_dtype = x.dtype if out_dtype is None else out_dtype
    out_bytes = jnp.dtype(out_dtype).itemsize

    vmem_limit = _vmem_limit_bytes()
    TB = _pick_batch_tile(B, S, vmem_limit, out_bytes=out_bytes)
    rows = TB * S
    if out_bytes == 2:
        assert rows % 16 == 0, "bf16 output blocks need TB*S to be a multiple of 16"
    grid = (B // TB,)

    x_flat = x.reshape(B * S, E)   # stays f32; cast to bf16 happens inside the kernel

    cost = pl.CostEstimate(
        flops=2 * B * S * (4 * E * E + 2 * S * E),
        transcendentals=B * S * S,
        bytes_accessed=B * S * E * (4 + out_bytes) + 4 * E * E * 2 + 4 * E * 4,
    )

    out = pl.pallas_call(
        functools.partial(mha_kernel, tb=TB, s=S),
        out_shape=jax.ShapeDtypeStruct((B * S, E), out_dtype),
        grid_spec=pltpu.PrefetchScalarGridSpec(
            num_scalar_prefetch=0,
            grid=grid,
            in_specs=[
                pl.BlockSpec((rows, E), lambda b: (b, 0)),      # x slab (TB*S, E) f32
                pl.BlockSpec((E, 3 * E), lambda b: (0, 0)),     # Wqkv^T (constant index -> resident)
                pl.BlockSpec((E, E), lambda b: (0, 0)),         # Wo^T
                pl.BlockSpec((1, 3 * E), lambda b: (0, 0)),     # bqkv
                pl.BlockSpec((1, E), lambda b: (0, 0)),         # bo
            ],
            out_specs=pl.BlockSpec((rows, E), lambda b: (b, 0)),
        ),
        compiler_params=pltpu.CompilerParams(
            dimension_semantics=("parallel",),
            vmem_limit_bytes=vmem_limit,
        ),
        cost_estimate=cost,
    )(x_flat, fused["wqkv"], fused["wo_t"], fused["bqkv"], fused["bo"])
    return out.reshape(B, S, E)


def reference_mha(x, params):
    """Pure-JAX f32 reference mirroring nn.MultiheadAttention (1 head, eval)."""
    E = x.shape[-1]
    q = x @ params["wq"].T + params["bq"]
    k = x @ params["wk"].T + params["bk"]
    v = x @ params["wv"].T + params["bv"]
    s = (q @ jnp.swapaxes(k, -1, -2)) / jnp.sqrt(jnp.float32(E // NUM_HEADS))
    p = jax.nn.softmax(s, axis=-1)
    o = p @ v
    return o @ params["wo"].T + params["bo"]


if __name__ == "__main__":
    B, S, E = 2, 8, EMB
    key = jax.random.PRNGKey(0)
    keys = jax.random.split(key, 10)

    # Deterministic synthetic parameters (shapes match nn.MultiheadAttention(128, 1))
    scale = 1.0 / jnp.sqrt(jnp.float32(E))
    params = {
        "wq": jax.random.normal(keys[0], (E, E), jnp.float32) * scale,
        "wk": jax.random.normal(keys[1], (E, E), jnp.float32) * scale,
        "wv": jax.random.normal(keys[2], (E, E), jnp.float32) * scale,
        "wo": jax.random.normal(keys[3], (E, E), jnp.float32) * scale,
        "bq": jax.random.normal(keys[4], (E,), jnp.float32) * 0.02,
        "bk": jax.random.normal(keys[5], (E,), jnp.float32) * 0.02,
        "bv": jax.random.normal(keys[6], (E,), jnp.float32) * 0.02,
        "bo": jax.random.normal(keys[7], (E,), jnp.float32) * 0.02,
    }

    x = jax.random.normal(keys[8], (B, S, E), jnp.float32)

    fused = fuse_mha_params(params)            # one-time weight prep, hoisted out of the call
    fused = jax.block_until_ready(fused)

    out = multihead_attention(x, fused)
    out = jax.block_until_ready(out)

    ref = reference_mha(x, params)
    assert out.shape == (B, S, E)
    # Tolerance reflects bf16 MXU operands (f32 accumulation) + approx reciprocal.
    assert jnp.allclose(out, ref, atol=5e-2, rtol=5e-2), "mismatch vs reference"

    print("KERNEL_OK")
</pallas_src>

<mosaic_0001>
module attributes {stable_mosaic.version = 11 : i64} {
  func.func @mha_kernel(%arg0: i32, %arg1: memref<16x128xf32, #tpu.memory_space<vmem>>, %arg2: memref<128x384xbf16, #tpu.memory_space<vmem>>, %arg3: memref<128x128xbf16, #tpu.memory_space<vmem>>, %arg4: memref<1x384xf32, #tpu.memory_space<vmem>>, %arg5: memref<1x128xf32, #tpu.memory_space<vmem>>, %arg6: memref<16x128xf32, #tpu.memory_space<vmem>>) attributes {dimension_semantics = [#tpu.dimension_semantics<parallel>], iteration_bounds = array<i64: 1>, scalar_prefetch = 0 : i64, scratch_operands = 0 : i64, tpu.core_type = #tpu.core_type<tc>, window_params = [{transform_indices = @transform_0, window_bounds = array<i64: 16, 128>}, {pipeline_mode = #tpu.pipeline_mode<synchronous>, transform_indices = @transform_1, window_bounds = array<i64: 128, 384>}, {pipeline_mode = #tpu.pipeline_mode<synchronous>, transform_indices = @transform_2, window_bounds = array<i64: 128, 128>}, {pipeline_mode = #tpu.pipeline_mode<synchronous>, transform_indices = @transform_3, window_bounds = array<i64: 1, 384>}, {pipeline_mode = #tpu.pipeline_mode<synchronous>, transform_indices = @transform_4, window_bounds = array<i64: 1, 128>}, {transform_indices = @transform_5, window_bounds = array<i64: 16, 128>}]} {
    %c0 = arith.constant 0 : index
    %c0_0 = arith.constant 0 : index
    %0 = vector.load %arg1[%c0, %c0_0] : memref<16x128xf32, #tpu.memory_space<vmem>>, vector<16x128xf32>
    %1 = arith.truncf %0 : vector<16x128xf32> to vector<16x128xbf16>
    %c0_1 = arith.constant 0 : index
    %c0_2 = arith.constant 0 : index
    %2 = vector.load %arg2[%c0_1, %c0_2] : memref<128x384xbf16, #tpu.memory_space<vmem>>, vector<128x384xbf16>
    %cst = arith.constant dense<0.000000e+00> : vector<16x384xf32>
    %3 = tpu.matmul %1, %2, %cst {dimension_numbers = #tpu.dot_dimension_numbers<[1], [0], [0], [1], [0, 0, 1, 1], [], []>} : vector<16x128xbf16>, vector<128x384xbf16>, vector<16x384xf32> -> vector<16x384xf32>
    %c0_3 = arith.constant 0 : index
    %c0_4 = arith.constant 0 : index
    %4 = vector.load %arg4[%c0_3, %c0_4] : memref<1x384xf32, #tpu.memory_space<vmem>>, vector<1x384xf32>
    %5 = vector.broadcast %4 : vector<1x384xf32> to vector<16x384xf32>
    %6 = arith.addf %3, %5 : vector<16x384xf32>
    %7 = vector.extract_strided_slice %6 {offsets = [0, 0], sizes = [16, 128], strides = [1, 1]} : vector<16x384xf32> to vector<16x128xf32>
    %8 = vector.shape_cast %7 : vector<16x128xf32> to vector<2x8x128xf32>
    %9 = arith.truncf %8 : vector<2x8x128xf32> to vector<2x8x128xbf16>
    %10 = vector.extract_strided_slice %6 {offsets = [0, 128], sizes = [16, 128], strides = [1, 1]} : vector<16x384xf32> to vector<16x128xf32>
    %11 = vector.shape_cast %10 : vector<16x128xf32> to vector<2x8x128xf32>
    %12 = arith.truncf %11 : vector<2x8x128xf32> to vector<2x8x128xbf16>
    %13 = vector.extract_strided_slice %6 {offsets = [0, 256], sizes = [16, 128], strides = [1, 1]} : vector<16x384xf32> to vector<16x128xf32>
    %14 = vector.shape_cast %13 : vector<16x128xf32> to vector<2x8x128xf32>
    %15 = arith.truncf %14 : vector<2x8x128xf32> to vector<2x8x128xbf16>
    %cst_5 = arith.constant dense<0.000000e+00> : vector<2x8x8xf32>
    %16 = tpu.matmul %9, %12, %cst_5 {dimension_numbers = #tpu.dot_dimension_numbers<[2], [2], [1], [1], [0, 0, 0, 1, 1, 1], [0], [0]>} : vector<2x8x128xbf16>, vector<2x8x128xbf16>, vector<2x8x8xf32> -> vector<2x8x8xf32>
    %cst_6 = arith.constant dense<0xFF800000> : vector<2x8xf32>
    %17 = vector.multi_reduction <maximumf>, %16, %cst_6 [2] : vector<2x8x8xf32> to vector<2x8xf32>
    %18 = vector.shape_cast %17 : vector<2x8xf32> to vector<2x8x1xf32>
    %19 = vector.broadcast %18 : vector<2x8x1xf32> to vector<2x8x8xf32>
    %20 = arith.subf %16, %19 : vector<2x8x8xf32>
    %21 = math.exp %20 : vector<2x8x8xf32>
    %cst_7 = arith.constant dense<0.000000e+00> : vector<2x8xf32>
    %22 = vector.multi_reduction <add>, %21, %cst_7 [2] : vector<2x8x8xf32> to vector<2x8xf32>
    %23 = vector.shape_cast %22 : vector<2x8xf32> to vector<2x8x1xf32>
    %24 = tpu.reciprocal %23 {approx = true} : vector<2x8x1xf32> -> vector<2x8x1xf32>
    %25 = vector.broadcast %24 : vector<2x8x1xf32> to vector<2x8x8xf32>
    %26 = arith.mulf %21, %25 : vector<2x8x8xf32>
    %27 = arith.truncf %26 : vector<2x8x8xf32> to vector<2x8x8xbf16>
    %cst_8 = arith.constant dense<0.000000e+00> : vector<2x8x128xf32>
    %28 = tpu.matmul %27, %15, %cst_8 {dimension_numbers = #tpu.dot_dimension_numbers<[2], [1], [1], [2], [0, 0, 0, 1, 1, 2], [0], [0]>} : vector<2x8x8xbf16>, vector<2x8x128xbf16>, vector<2x8x128xf32> -> vector<2x8x128xf32>
    %29 = vector.shape_cast %28 : vector<2x8x128xf32> to vector<16x128xf32>
    %30 = arith.truncf %29 : vector<16x128xf32> to vector<16x128xbf16>
    %c0_9 = arith.constant 0 : index
    %c0_10 = arith.constant 0 : index
    %31 = vector.load %arg3[%c0_9, %c0_10] : memref<128x128xbf16, #tpu.memory_space<vmem>>, vector<128x128xbf16>
    %cst_11 = arith.constant dense<0.000000e+00> : vector<16x128xf32>
    %32 = tpu.matmul %30, %31, %cst_11 {dimension_numbers = #tpu.dot_dimension_numbers<[1], [0], [0], [1], [0, 0, 1, 1], [], []>} : vector<16x128xbf16>, vector<128x128xbf16>, vector<16x128xf32> -> vector<16x128xf32>
    %c0_12 = arith.constant 0 : index
    %c0_13 = arith.constant 0 : index
    %33 = vector.load %arg5[%c0_12, %c0_13] : memref<1x128xf32, #tpu.memory_space<vmem>>, vector<1x128xf32>
    %34 = vector.broadcast %33 : vector<1x128xf32> to vector<16x128xf32>
    %35 = arith.addf %32, %34 : vector<16x128xf32>
    %c0_14 = arith.constant 0 : index
    %c0_15 = arith.constant 0 : index
    %36 = vector.load %arg6[%c0_14, %c0_15] : memref<16x128xf32, #tpu.memory_space<vmem>>, vector<16x128xf32>
    tpu.vector_store %arg6[%c0_14, %c0_15], %35 {strides = array<i32>} : memref<16x128xf32, #tpu.memory_space<vmem>>, vector<16x128xf32>,
    return
  }
  func.func @transform_0(%arg0: i32) -> (i32, i32) {
    %c0_i32 = arith.constant 0 : i32
    %c0_i32_0 = arith.constant 0 : i32
    return %arg0, %c0_i32 : i32, i32
  }
  func.func @transform_1(%arg0: i32) -> (i32, i32) {
    %c0_i32 = arith.constant 0 : i32
    %c0_i32_0 = arith.constant 0 : i32
    %c0_i32_1 = arith.constant 0 : i32
    return %c0_i32, %c0_i32_0 : i32, i32
  }
  func.func @transform_2(%arg0: i32) -> (i32, i32) {
    %c0_i32 = arith.constant 0 : i32
    %c0_i32_0 = arith.constant 0 : i32
    %c0_i32_1 = arith.constant 0 : i32
    return %c0_i32, %c0_i32_0 : i32, i32
  }
  func.func @transform_3(%arg0: i32) -> (i32, i32) {
    %c0_i32 = arith.constant 0 : i32
    %c0_i32_0 = arith.constant 0 : i32
    %c0_i32_1 = arith.constant 0 : i32
    return %c0_i32, %c0_i32_0 : i32, i32
  }
  func.func @transform_4(%arg0: i32) -> (i32, i32) {
    %c0_i32 = arith.constant 0 : i32
    %c0_i32_0 = arith.constant 0 : i32
    %c0_i32_1 = arith.constant 0 : i32
    return %c0_i32, %c0_i32_0 : i32, i32
  }
  func.func @transform_5(%arg0: i32) -> (i32, i32) {
    %c0_i32 = arith.constant 0 : i32
    %c0_i32_0 = arith.constant 0 : i32
    return %arg0, %c0_i32 : i32, i32
  }
}

</mosaic_0001>

<llo_original>
// kernel: tpu_custom_call.1
$region0: #{tpu_custom_call.1}
  #allocation0 [shape = 'u32[]', space=smem, size = 0x4, offset = 0x4, fixed_abs, tag = 'smem constant byte address 0x4 - core index']
  #allocation1 [shape = 'u32[144,128]{1,0:T(1,128)}', space=vmem, size = 0x12000, scoped, tag = 'internal scratch']
  %s0 = inlined_call_operand.hbm [shape: f32[16,128], index: 0, kind: input, shape index: {}]
  %s1 = inlined_call_operand.hbm [shape: bf16[128,384], index: 1, kind: input, shape index: {}]
  %s2 = inlined_call_operand.hbm [shape: bf16[128,128], index: 2, kind: input, shape index: {}]
  %s3 = inlined_call_operand.vmem [shape: f32[1,384], index: 3, kind: input, shape index: {}]
  %s4 = inlined_call_operand.vmem [shape: f32[1,128], index: 4, kind: input, shape index: {}]
  %s5 = inlined_call_operand.hbm [shape: f32[16,128], index: 5, kind: output, shape index: {}]
  %s6 = sld [smem:[#allocation0]]
  $region42: #{tpu_custom_call.1} parent=0
    _
  %s8 = ssub.s32 1, %s6
  %s9 = scalar_select 0, %s8, %s6
  $region1: #{tpu_custom_call.1} parent=0
    #allocation2 [shape = 'u8[8192]{0}', space=vmem, size = 0x2000, scoped, tag = 'input window, operand 0, single buffered']
    #allocation3 [shape = 's32[1]{0}', space=sflag, size = 0x4, scoped, tag = 'scoped memory for tpu_custom_call.1']
    #allocation4 [shape = 's32[1]{0}', space=sflag, size = 0x4, scoped, tag = 'scoped memory for tpu_custom_call.1']
    #allocation5 [shape = 'u8[98304]{0}', space=vmem, size = 0x18000, scoped, tag = 'input window, operand 1, single buffered']
    #allocation6 [shape = 's32[1]{0}', space=sflag, size = 0x4, scoped, tag = 'scoped memory for tpu_custom_call.1']
    #allocation7 [shape = 'u8[32768]{0}', space=vmem, size = 0x8000, scoped, tag = 'input window, operand 2, single buffered']
    #allocation8 [shape = 'u8[8192]{0}', space=vmem, size = 0x2000, scoped, tag = 'output window, operand 0, single buffered']
    %10 = vsyncpa [#allocation3], 0
    %11 = vsyncpa [#allocation6], 0
    %12 = vsyncpa [#allocation4], 0
    // Predicated region
    $region2: #{tpu_custom_call.1} parent=1 // pred_check
      _
    $region3: #{tpu_custom_call.1} parent=1 // pred_check_branch
      %14 = sbr.rel (0) target = $region5
    $region4: #{tpu_custom_call.1} parent=1 // pred_region
      %s16 = ssub.s32 256, 256
      %17 = vsyncadd [#allocation3], %s16
      %s18 = sshll.u32 [#allocation2], 4
      %s19 = int_to_ptr.vmem [resolvable:$true] %s18
      %24 = dma.hbm_to_vmem [thread:$0]  %s0, 256, %s19, [#allocation3], 128, 128, 8
    $region5: #{tpu_custom_call.1} parent=1 // pred_fallthru
      _
    // Predicated region
    $region6: #{tpu_custom_call.1} parent=1 // pred_check
      _
    $region7: #{tpu_custom_call.1} parent=1 // pred_check_branch
      %26 = sbr.rel (0) target = $region9
    $region8: #{tpu_custom_call.1} parent=1 // pred_region
      %s28 = ssub.s32 3072, 3072
      %29 = vsyncadd [#allocation6], %s28
      %s30 = sshll.u32 [#allocation5], 4
      %s31 = int_to_ptr.vmem [resolvable:$true] %s30
      %36 = dma.hbm_to_vmem [thread:$0]  %s1, 3072, %s31, [#allocation6], 192, 192, 12
    $region9: #{tpu_custom_call.1} parent=1 // pred_fallthru
      _
    // Predicated region
    $region10: #{tpu_custom_call.1} parent=1 // pred_check
      _
    $region11: #{tpu_custom_call.1} parent=1 // pred_check_branch
      %38 = sbr.rel (0) target = $region13
    $region12: #{tpu_custom_call.1} parent=1 // pred_region
      %s40 = ssub.s32 1024, 1024
      %41 = vsyncadd [#allocation6], %s40
      %s42 = sshll.u32 [#allocation7], 4
      %s43 = int_to_ptr.vmem [resolvable:$true] %s42
      %48 = dma.hbm_to_vmem [thread:$0]  %s2, 1024, %s43, [#allocation6], 64, 64, 4
    $region13: #{tpu_custom_call.1} parent=1 // pred_fallthru
      _
    // Predicated region
    $region14: #{tpu_custom_call.1} parent=1 // pred_check
      _
    $region15: #{tpu_custom_call.1} parent=1 // pred_check_branch
      %50 = sbr.rel (0) target = $region17
    $region16: #{tpu_custom_call.1} parent=1 // pred_region
      _
    $region17: #{tpu_custom_call.1} parent=1 // pred_fallthru
      _
    // Predicated region
    $region18: #{tpu_custom_call.1} parent=1 // pred_check
      _
    $region19: #{tpu_custom_call.1} parent=1 // pred_check_branch
      %52 = sbr.rel (0) target = $region21
    $region20: #{tpu_custom_call.1} parent=1 // pred_region
      _
    $region21: #{tpu_custom_call.1} parent=1 // pred_fallthru
      _
    // Predicated region
    $region22: #{tpu_custom_call.1} parent=1 // pred_check
      _
    $region23: #{tpu_custom_call.1} parent=1 // pred_check_branch
      %54 = sbr.rel (0) target = $region25
    $region24: #{tpu_custom_call.1} parent=1 // pred_region
      %55 = dma.done [#allocation3], 256
    $region25: #{tpu_custom_call.1} parent=1 // pred_fallthru
      _
    // Predicated region
    $region26: #{tpu_custom_call.1} parent=1 // pred_check
      _
    $region27: #{tpu_custom_call.1} parent=1 // pred_check_branch
      %57 = sbr.rel (0) target = $region29
    $region28: #{tpu_custom_call.1} parent=1 // pred_region
      %58 = dma.done [#allocation6], 3072
    $region29: #{tpu_custom_call.1} parent=1 // pred_fallthru
      _
    // Predicated region
    $region30: #{tpu_custom_call.1} parent=1 // pred_check
      _
    $region31: #{tpu_custom_call.1} parent=1 // pred_check_branch
      %60 = sbr.rel (0) target = $region33
    $region32: #{tpu_custom_call.1} parent=1 // pred_region
      %61 = dma.done [#allocation6], 1024
    $region33: #{tpu_custom_call.1} parent=1 // pred_fallthru
      _
    %v63 = vld [vmem:[#allocation2] sm:$0xff]
    %v64 = vld [vmem:[#allocation2 + $0x8] sm:$0xff]
    %v65 = vpack.c.bf16 %v64, %v63
    %v66 = vld [vmem:[#allocation5] sm:$0xff]
    %v67 = vld [vmem:[#allocation5 + $0x8] sm:$0xf]
    %v68 = vld [vmem:[#allocation5 + $0xc] sm:$0xff]
    %v69 = vld [vmem:[#allocation5 + $0x14] sm:$0xf]
    %v70 = vld [vmem:[#allocation5 + $0x18] sm:$0xff]
    %v71 = vld [vmem:[#allocation5 + $0x20] sm:$0xf]
    %v72 = vld [vmem:[#allocation5 + $0x24] sm:$0xff]
    %v73 = vld [vmem:[#allocation5 + $0x2c] sm:$0xf]
    %v74 = vld [vmem:[#allocation5 + $0x30] sm:$0xff]
    %v75 = vld [vmem:[#allocation5 + $0x38] sm:$0xf]
    %v76 = vld [vmem:[#allocation5 + $0x3c] sm:$0xff]
    %v77 = vld [vmem:[#allocation5 + $0x44] sm:$0xf]
    %v78 = vld [vmem:[#allocation5 + $0x48] sm:$0xff]
    %v79 = vld [vmem:[#allocation5 + $0x50] sm:$0xf]
    %v80 = vld [vmem:[#allocation5 + $0x54] sm:$0xff]
    %v81 = vld [vmem:[#allocation5 + $0x5c] sm:$0xf]
    %v82 = vld [vmem:[#allocation5 + $0x60] sm:$0xff]
    %v83 = vld [vmem:[#allocation5 + $0x68] sm:$0xf]
    %v84 = vld [vmem:[#allocation5 + $0x6c] sm:$0xff]
    %v85 = vld [vmem:[#allocation5 + $0x74] sm:$0xf]
    %v86 = vld [vmem:[#allocation5 + $0x78] sm:$0xff]
    %v87 = vld [vmem:[#allocation5 + $0x80] sm:$0xf]
    %v88 = vld [vmem:[#allocation5 + $0x84] sm:$0xff]
    %v89 = vld [vmem:[#allocation5 + $0x8c] sm:$0xf]
    %v90 = vld [vmem:[#allocation5 + $0x90] sm:$0xff]
    %v91 = vld [vmem:[#allocation5 + $0x98] sm:$0xf]
    %v92 = vld [vmem:[#allocation5 + $0x9c] sm:$0xff]
    %v93 = vld [vmem:[#allocation5 + $0xa4] sm:$0xf]
    %v94 = vld [vmem:[#allocation5 + $0xa8] sm:$0xff]
    %v95 = vld [vmem:[#allocation5 + $0xb0] sm:$0xf]
    %v96 = vld [vmem:[#allocation5 + $0xb4] sm:$0xff]
    %v97 = vld [vmem:[#allocation5 + $0xbc] sm:$0xf]
    %v98 = vld [vmem:[%s3] sm:$0x7]
    %v100 = vlaneseq
    %v101 = vshrl.u32 %v100, 7
    %v102 = vsub.s32 0, %v101
    %v103 = vrot.slane %v98, %v102
    %v104 = vlaneseq
    %v105 = vshrl.u32 %v104, 7
    %v106 = vsub.s32 1, %v105
    %v107 = vrot.slane %v98, %v106
    %v108 = vlaneseq
    %v109 = vshrl.u32 %v108, 7
    %v110 = vsub.s32 2, %v109
    %v111 = vrot.slane %v98, %v110
    %v147 = vunpack.c.l.b16 %v66
    %v148 = vunpack.c.h.b16 %v66
    %v149 = vunpack.c.l.b16 %v67
    %v150 = vunpack.c.l.b16 %v68
    %v151 = vunpack.c.h.b16 %v68
    %v152 = vunpack.c.l.b16 %v69
    %v153 = vunpack.c.l.b16 %v70
    %v154 = vunpack.c.h.b16 %v70
    %v155 = vunpack.c.l.b16 %v71
    %v156 = vunpack.c.l.b16 %v72
    %v157 = vunpack.c.h.b16 %v72
    %v158 = vunpack.c.l.b16 %v73
    %v159 = vunpack.c.l.b16 %v74
    %v160 = vunpack.c.h.b16 %v74
    %v161 = vunpack.c.l.b16 %v75
    %v162 = vunpack.c.l.b16 %v76
    %v163 = vunpack.c.h.b16 %v76
    %v164 = vunpack.c.l.b16 %v77
    %v165 = vunpack.c.l.b16 %v78
    %v166 = vunpack.c.h.b16 %v78
    %v167 = vunpack.c.l.b16 %v79
    %v168 = vunpack.c.l.b16 %v80
    %v169 = vunpack.c.h.b16 %v80
    %v170 = vunpack.c.l.b16 %v81
    %v171 = vunpack.c.l.b16 %v82
    %v172 = vunpack.c.h.b16 %v82
    %v173 = vunpack.c.l.b16 %v83
    %v174 = vunpack.c.l.b16 %v84
    %v175 = vunpack.c.h.b16 %v84
    %v176 = vunpack.c.l.b16 %v85
    %v177 = vunpack.c.l.b16 %v86
    %v178 = vunpack.c.h.b16 %v86
    %v179 = vunpack.c.l.b16 %v87
    %v180 = vunpack.c.l.b16 %v88
    %v181 = vunpack.c.h.b16 %v88
    %v182 = vunpack.c.l.b16 %v89
    %v183 = vunpack.c.l.b16 %v90
    %v184 = vunpack.c.h.b16 %v90
    %v185 = vunpack.c.l.b16 %v91
    %v186 = vunpack.c.l.b16 %v92
    %v187 = vunpack.c.h.b16 %v92
    %v188 = vunpack.c.l.b16 %v93
    %v189 = vunpack.c.l.b16 %v94
    %v190 = vunpack.c.h.b16 %v94
    %v191 = vunpack.c.l.b16 %v95
    %v192 = vunpack.c.l.b16 %v96
    %v193 = vunpack.c.h.b16 %v96
    %v194 = vunpack.c.l.b16 %v97
    %v195 = vpack.c.b16 %v150, %v147
    %v196 = vpack.c.b16 %v151, %v148
    %v197 = vpack.c.b16 %v152, %v149
    %v198 = vpack.c.b16 %v156, %v153
    %v199 = vpack.c.b16 %v157, %v154
    %v200 = vpack.c.b16 %v158, %v155
    %v201 = vpack.c.b16 %v162, %v159
    %v202 = vpack.c.b16 %v163, %v160
    %v203 = vpack.c.b16 %v164, %v161
    %v204 = vpack.c.b16 %v168, %v165
    %v205 = vpack.c.b16 %v169, %v166
    %v206 = vpack.c.b16 %v170, %v167
    %v207 = vpack.c.b16 %v174, %v171
    %v208 = vpack.c.b16 %v175, %v172
    %v209 = vpack.c.b16 %v176, %v173
    %v210 = vpack.c.b16 %v180, %v177
    %v211 = vpack.c.b16 %v181, %v178
    %v212 = vpack.c.b16 %v182, %v179
    %v213 = vpack.c.b16 %v186, %v183
    %v214 = vpack.c.b16 %v187, %v184
    %v215 = vpack.c.b16 %v188, %v185
    %v216 = vpack.c.b16 %v192, %v189
    %v217 = vpack.c.b16 %v193, %v190
    %v218 = vpack.c.b16 %v194, %v191
    %243 = vmatprep.subr.bf16.mxu0 %v196
    %244 = vmatpush1.bf16.msra.mxu0 %v195
    %245 = vmatprep.subr.bf16.mxu0 %v199
    %246 = vmatpush1.bf16.msra.mxu0 %v198
    %247 = vmatprep.subr.bf16.mxu0 %v202
    %248 = vmatpush1.bf16.msra.mxu0 %v201
    %249 = vmatprep.subr.bf16.mxu0 %v205
    %250 = vmatpush1.bf16.msra.mxu0 %v204
    %251 = vmatprep.subr.bf16.mxu0 %v208
    %252 = vmatpush1.bf16.msra.mxu0 %v207
    %253 = vmatprep.subr.bf16.mxu0 %v211
    %254 = vmatpush1.bf16.msra.mxu0 %v210
    %255 = vmatprep.subr.bf16.mxu0 %v214
    %256 = vmatpush1.bf16.msra.mxu0 %v213
    %257 = vmatprep.subr.bf16.mxu0 %v217
    %258 = vmatpush1.bf16.msra.mxu0 %v216
    %259 = vmatprep.subr.bf16.mxu0 0
    %260 = vmatpush1.bf16.msra.mxu0 0
    %261 = vmatprep.subr.bf16.mxu0 0
    %262 = vmatpush1.bf16.msra.mxu0 0
    %263 = vmatprep.subr.bf16.mxu0 0
    %264 = vmatpush1.bf16.msra.mxu0 0
    %265 = vmatprep.subr.bf16.mxu0 0
    %266 = vmatpush1.bf16.msra.mxu0 0
    %267 = vmatprep.subr.bf16.mxu0 0
    %268 = vmatpush1.bf16.msra.mxu0 0
    %269 = vmatprep.subr.bf16.mxu0 0
    %270 = vmatpush1.bf16.msra.mxu0 0
    %271 = vmatprep.subr.bf16.mxu0 0
    %272 = vmatpush1.bf16.msra.mxu0 0
    %273 = vmatprep.subr.bf16.mxu0 0
    %274 = vmatpush1.bf16.msra.mxu0 0
    %275 = vmatprep.mubr.bf16.mxu0 0
    %276 = vmatmul.mubr.bf16.gmra.mrb[0].mxu0 %v65
    %v277 = vpop.f32.mrb[0].mxu0
    %v278 = vadd.f32 %v103, %v277
    %v279 = vpop.f32.mrb[0].mxu0
    %v280 = vadd.f32 %v107, %v279
    %v281 = vpop.f32.mrb[0].mxu0
    %v282 = vadd.f32 %v103, %v281
    %v283 = vpop.f32.mrb[0].mxu0
    %v284 = vadd.f32 %v107, %v283
    %285 = vdwg.mxu0
    %286 = vmatprep.subr.bf16.mxu0 0
    %287 = vmatpush1.bf16.msra.mxu0 %v197
    %288 = vmatprep.subr.bf16.mxu0 0
    %289 = vmatpush1.bf16.msra.mxu0 %v200
    %290 = vmatprep.subr.bf16.mxu0 0
    %291 = vmatpush1.bf16.msra.mxu0 %v203
    %292 = vmatprep.subr.bf16.mxu0 0
    %293 = vmatpush1.bf16.msra.mxu0 %v206
    %294 = vmatprep.subr.bf16.mxu0 0
    %295 = vmatpush1.bf16.msra.mxu0 %v209
    %296 = vmatprep.subr.bf16.mxu0 0
    %297 = vmatpush1.bf16.msra.mxu0 %v212
    %298 = vmatprep.subr.bf16.mxu0 0
    %299 = vmatpush1.bf16.msra.mxu0 %v215
    %300 = vmatprep.subr.bf16.mxu0 0
    %301 = vmatpush1.bf16.msra.mxu0 %v218
    %302 = vmatprep.subr.bf16.mxu0 0
    %303 = vmatpush1.bf16.msra.mxu0 0
    %304 = vmatprep.subr.bf16.mxu0 0
    %305 = vmatpush1.bf16.msra.mxu0 0
    %306 = vmatprep.subr.bf16.mxu0 0
    %307 = vmatpush1.bf16.msra.mxu0 0
    %308 = vmatprep.subr.bf16.mxu0 0
    %309 = vmatpush1.bf16.msra.mxu0 0
    %310 = vmatprep.subr.bf16.mxu0 0
    %311 = vmatpush1.bf16.msra.mxu0 0
    %312 = vmatprep.subr.bf16.mxu0 0
    %313 = vmatpush1.bf16.msra.mxu0 0
    %314 = vmatprep.subr.bf16.mxu0 0
    %315 = vmatpush1.bf16.msra.mxu0 0
    %316 = vmatprep.subr.bf16.mxu0 0
    %317 = vmatpush1.bf16.msra.mxu0 0
    %318 = vmatprep.mubr.bf16.mxu0 0
    %319 = vmatmul.mubr.bf16.gmra.mrb[0].mxu0 %v65
    %v320 = vpop.f32.mrb[0].mxu0
    %v321 = vadd.f32 %v111, %v320
    %v322 = vpop.f32.mrb[0].mxu0
    %v323 = vpop.f32.mrb[0].mxu0
    %v324 = vadd.f32 %v111, %v323
    %v325 = vpop.f32.mrb[0].mxu0
    %326 = vdwg.mxu0
    %v327 = vpack.c.bf16 %v278, %v278
    %v328 = vpack.c.bf16 %v282, %v282
    %v329 = vpack.c.bf16 %v280, %v280
    %v330 = vpack.c.bf16 %v284, %v284
    %v331 = vpack.c.bf16 %v321, %v321
    %v332 = vpack.c.bf16 %v324, %v324
    %333 = vmatprep.subr.bf16.mxu0 0
    %334 = vmatpush1.bf16.xpose.msra.mxu0 %v329
    %335 = vmatprep.subr.bf16.mxu0 0
    %336 = vmatpush1.bf16.xpose.msra.mxu0 0
    %337 = vmatprep.subr.bf16.mxu0 0
    %338 = vmatpush1.bf16.xpose.msra.mxu0 0
    %339 = vmatprep.subr.bf16.mxu0 0
    %340 = vmatpush1.bf16.xpose.msra.mxu0 0
    %341 = vmatprep.subr.bf16.mxu0 0
    %342 = vmatpush1.bf16.xpose.msra.mxu0 0
    %343 = vmatprep.subr.bf16.mxu0 0
    %344 = vmatpush1.bf16.xpose.msra.mxu0 0
    %345 = vmatprep.subr.bf16.mxu0 0
    %346 = vmatpush1.bf16.xpose.msra.mxu0 0
    %347 = vmatprep.subr.bf16.mxu0 0
    %348 = vmatpush1.bf16.xpose.msra.mxu0 0
    %349 = vmatprep.subr.bf16.mxu0 0
    %350 = vmatpush1.bf16.xpose.msra.mxu0 0
    %351 = vmatprep.subr.bf16.mxu0 0
    %352 = vmatpush1.bf16.xpose.msra.mxu0 0
    %353 = vmatprep.subr.bf16.mxu0 0
    %354 = vmatpush1.bf16.xpose.msra.mxu0 0
    %355 = vmatprep.subr.bf16.mxu0 0
    %356 = vmatpush1.bf16.xpose.msra.mxu0 0
    %357 = vmatprep.subr.bf16.mxu0 0
    %358 = vmatpush1.bf16.xpose.msra.mxu0 0
    %359 = vmatprep.subr.bf16.mxu0 0
    %360 = vmatpush1.bf16.xpose.msra.mxu0 0
    %361 = vmatprep.subr.bf16.mxu0 0
    %362 = vmatpush1.bf16.xpose.msra.mxu0 0
    %363 = vmatprep.subr.bf16.mxu0 0
    %364 = vmatpush1.bf16.xpose.msra.mxu0 0
    %365 = vmatprep.mubr.bf16.mxu0 0
    %366 = vmatmul.mubr.bf16.gmra.mrb[0].mxu0 %v327
    %v367 = vpop.f32.mrb[0].mxu0
    %v368 = vadd.f32 0.0, %v367
    %v369 = vpop.f32.mrb[0].mxu0
    %v370 = vpop.f32.mrb[0].mxu0
    %v371 = vpop.f32.mrb[0].mxu0
    %372 = vdwg.mxu0
    %373 = vmatprep.subr.bf16.mxu0 0
    %374 = vmatpush1.bf16.xpose.msra.mxu0 %v330
    %375 = vmatprep.subr.bf16.mxu0 0
    %376 = vmatpush1.bf16.xpose.msra.mxu0 0
    %377 = vmatprep.subr.bf16.mxu0 0
    %378 = vmatpush1.bf16.xpose.msra.mxu0 0
    %379 = vmatprep.subr.bf16.mxu0 0
    %380 = vmatpush1.bf16.xpose.msra.mxu0 0
    %381 = vmatprep.subr.bf16.mxu0 0
    %382 = vmatpush1.bf16.xpose.msra.mxu0 0
    %383 = vmatprep.subr.bf16.mxu0 0
    %384 = vmatpush1.bf16.xpose.msra.mxu0 0
    %385 = vmatprep.subr.bf16.mxu0 0
    %386 = vmatpush1.bf16.xpose.msra.mxu0 0
    %387 = vmatprep.subr.bf16.mxu0 0
    %388 = vmatpush1.bf16.xpose.msra.mxu0 0
    %389 = vmatprep.subr.bf16.mxu0 0
    %390 = vmatpush1.bf16.xpose.msra.mxu0 0
    %391 = vmatprep.subr.bf16.mxu0 0
    %392 = vmatpush1.bf16.xpose.msra.mxu0 0
    %393 = vmatprep.subr.bf16.mxu0 0
    %394 = vmatpush1.bf16.xpose.msra.mxu0 0
    %395 = vmatprep.subr.bf16.mxu0 0
    %396 = vmatpush1.bf16.xpose.msra.mxu0 0
    %397 = vmatprep.subr.bf16.mxu0 0
    %398 = vmatpush1.bf16.xpose.msra.mxu0 0
    %399 = vmatprep.subr.bf16.mxu0 0
    %400 = vmatpush1.bf16.xpose.msra.mxu0 0
    %401 = vmatprep.subr.bf16.mxu0 0
    %402 = vmatpush1.bf16.xpose.msra.mxu0 0
    %403 = vmatprep.subr.bf16.mxu0 0
    %404 = vmatpush1.bf16.xpose.msra.mxu0 0
    %405 = vmatprep.mubr.bf16.mxu0 0
    %406 = vmatmul.mubr.bf16.gmra.mrb[0].mxu0 %v328
    %v407 = vpop.f32.mrb[0].mxu0
    %v408 = vadd.f32 0.0, %v407
    %v409 = vpop.f32.mrb[0].mxu0
    %v410 = vpop.f32.mrb[0].mxu0
    %v411 = vpop.f32.mrb[0].mxu0
    %412 = vdwg.mxu0
    %vm413 = vcmask 64512
    %v414 = vsel %vm413, %v368, -inf
    %415 = vmax.xlane.f32.xlu0 %v414
    %v416 = vpop.xlane.xlu0 %415
    %v417 = vsel %vm413, %v408, -inf
    %418 = vmax.xlane.f32.xlu0 %v417
    %v419 = vpop.xlane.xlu0 %418
    %v420 = vsub.f32 %v368, %v416
    %v421 = vsub.f32 %v408, %v419
    %v422 = vmul.f32 %v420, 1.442695
    %v423 = vpow.pop %v422
    %v424 = vmul.f32 %v421, 1.442695
    %v425 = vpow.pop %v424
    %v426 = vsel %vm413, %v423, 0.0
    %427 = vadd.xlane.f32.xlu0 %v426
    %v428 = vpop.xlane.xlu0 %427
    %v429 = vsel %vm413, %v425, 0.0
    %430 = vadd.xlane.f32.xlu0 %v429
    %v431 = vpop.xlane.xlu0 %430
    %v432 = vrcp.pop %v428
    %v433 = vrcp.pop %v431
    %v434 = vmul.f32 %v423, %v432
    %v435 = vmul.f32 %v425, %v433
    %v436 = vpack.c.bf16 %v434, %v434
    %v437 = vpack.c.bf16 %v435, %v435
    %v439 = vsel %vm413, %v436, 0
    %vm441 = vcmask 1043456
    %v443 = vsel %vm441, %v331, 0
    %445 = vmatprep.subr.bf16.mxu0 0
    %446 = vmatpush1.bf16.msra.mxu0 %v443
    %447 = vmatprep.subr.bf16.mxu0 0
    %448 = vmatpush1.bf16.msra.mxu0 0
    %449 = vmatprep.subr.bf16.mxu0 0
    %450 = vmatpush1.bf16.msra.mxu0 0
    %451 = vmatprep.subr.bf16.mxu0 0
    %452 = vmatpush1.bf16.msra.mxu0 0
    %453 = vmatprep.subr.bf16.mxu0 0
    %454 = vmatpush1.bf16.msra.mxu0 0
    %455 = vmatprep.subr.bf16.mxu0 0
    %456 = vmatpush1.bf16.msra.mxu0 0
    %457 = vmatprep.subr.bf16.mxu0 0
    %458 = vmatpush1.bf16.msra.mxu0 0
    %459 = vmatprep.subr.bf16.mxu0 0
    %460 = vmatpush1.bf16.msra.mxu0 0
    %461 = vmatprep.subr.bf16.mxu0 0
    %462 = vmatpush1.bf16.msra.mxu0 0
    %463 = vmatprep.subr.bf16.mxu0 0
    %464 = vmatpush1.bf16.msra.mxu0 0
    %465 = vmatprep.subr.bf16.mxu0 0
    %466 = vmatpush1.bf16.msra.mxu0 0
    %467 = vmatprep.subr.bf16.mxu0 0
    %468 = vmatpush1.bf16.msra.mxu0 0
    %469 = vmatprep.subr.bf16.mxu0 0
    %470 = vmatpush1.bf16.msra.mxu0 0
    %471 = vmatprep.subr.bf16.mxu0 0
    %472 = vmatpush1.bf16.msra.mxu0 0
    %473 = vmatprep.subr.bf16.mxu0 0
    %474 = vmatpush1.bf16.msra.mxu0 0
    %475 = vmatprep.subr.bf16.mxu0 0
    %476 = vmatpush1.bf16.msra.mxu0 0
    %477 = vmatprep.mubr.bf16.mxu0 0
    %478 = vmatmul.mubr.bf16.gmra.mrb[0].mxu0 %v439
    %v479 = vpop.f32.mrb[0].mxu0
    %v480 = vadd.f32 0.0, %v479
    %v481 = vpop.f32.mrb[0].mxu0
    %v482 = vpop.f32.mrb[0].mxu0
    %v483 = vpop.f32.mrb[0].mxu0
    %484 = vdwg.mxu0
    %v486 = vsel %vm413, %v437, 0
    %v489 = vsel %vm441, %v332, 0
    %491 = vmatprep.subr.bf16.mxu0 0
    %492 = vmatpush1.bf16.msra.mxu0 %v489
    %493 = vmatprep.subr.bf16.mxu0 0
    %494 = vmatpush1.bf16.msra.mxu0 0
    %495 = vmatprep.subr.bf16.mxu0 0
    %496 = vmatpush1.bf16.msra.mxu0 0
    %497 = vmatprep.subr.bf16.mxu0 0
    %498 = vmatpush1.bf16.msra.mxu0 0
    %499 = vmatprep.subr.bf16.mxu0 0
    %500 = vmatpush1.bf16.msra.mxu0 0
    %501 = vmatprep.subr.bf16.mxu0 0
    %502 = vmatpush1.bf16.msra.mxu0 0
    %503 = vmatprep.subr.bf16.mxu0 0
    %504 = vmatpush1.bf16.msra.mxu0 0
    %505 = vmatprep.subr.bf16.mxu0 0
    %506 = vmatpush1.bf16.msra.mxu0 0
    %507 = vmatprep.subr.bf16.mxu0 0
    %508 = vmatpush1.bf16.msra.mxu0 0
    %509 = vmatprep.subr.bf16.mxu0 0
    %510 = vmatpush1.bf16.msra.mxu0 0
    %511 = vmatprep.subr.bf16.mxu0 0
    %512 = vmatpush1.bf16.msra.mxu0 0
    %513 = vmatprep.subr.bf16.mxu0 0
    %514 = vmatpush1.bf16.msra.mxu0 0
    %515 = vmatprep.subr.bf16.mxu0 0
    %516 = vmatpush1.bf16.msra.mxu0 0
    %517 = vmatprep.subr.bf16.mxu0 0
    %518 = vmatpush1.bf16.msra.mxu0 0
    %519 = vmatprep.subr.bf16.mxu0 0
    %520 = vmatpush1.bf16.msra.mxu0 0
    %521 = vmatprep.subr.bf16.mxu0 0
    %522 = vmatpush1.bf16.msra.mxu0 0
    %523 = vmatprep.mubr.bf16.mxu0 0
    %524 = vmatmul.mubr.bf16.gmra.mrb[0].mxu0 %v486
    %v525 = vpop.f32.mrb[0].mxu0
    %v526 = vadd.f32 0.0, %v525
    %v527 = vpop.f32.mrb[0].mxu0
    %v528 = vpop.f32.mrb[0].mxu0
    %v529 = vpop.f32.mrb[0].mxu0
    %530 = vdwg.mxu0
    %v531 = vpack.c.bf16 %v526, %v480
    %v532 = vld [vmem:[#allocation7] sm:$0xf]
    %v533 = vld [vmem:[#allocation7 + $0x4] sm:$0xf]
    %v534 = vld [vmem:[#allocation7 + $0x8] sm:$0xf]
    %v535 = vld [vmem:[#allocation7 + $0xc] sm:$0xf]
    %v536 = vld [vmem:[#allocation7 + $0x10] sm:$0xf]
    %v537 = vld [vmem:[#allocation7 + $0x14] sm:$0xf]
    %v538 = vld [vmem:[#allocation7 + $0x18] sm:$0xf]
    %v539 = vld [vmem:[#allocation7 + $0x1c] sm:$0xf]
    %v540 = vld [vmem:[#allocation7 + $0x20] sm:$0xf]
    %v541 = vld [vmem:[#allocation7 + $0x24] sm:$0xf]
    %v542 = vld [vmem:[#allocation7 + $0x28] sm:$0xf]
    %v543 = vld [vmem:[#allocation7 + $0x2c] sm:$0xf]
    %v544 = vld [vmem:[#allocation7 + $0x30] sm:$0xf]
    %v545 = vld [vmem:[#allocation7 + $0x34] sm:$0xf]
    %v546 = vld [vmem:[#allocation7 + $0x38] sm:$0xf]
    %v547 = vld [vmem:[#allocation7 + $0x3c] sm:$0xf]
    %v548 = vld [vmem:[%s4] sm:$0x1]
    %v550 = vlaneseq
    %v551 = vshrl.u32 %v550, 7
    %v552 = vsub.s32 0, %v551
    %v553 = vrot.slane %v548, %v552
    %v571 = vunpack.c.l.b16 %v532
    %v572 = vunpack.c.l.b16 %v533
    %v573 = vunpack.c.l.b16 %v534
    %v574 = vunpack.c.l.b16 %v535
    %v575 = vunpack.c.l.b16 %v536
    %v576 = vunpack.c.l.b16 %v537
    %v577 = vunpack.c.l.b16 %v538
    %v578 = vunpack.c.l.b16 %v539
    %v579 = vunpack.c.l.b16 %v540
    %v580 = vunpack.c.l.b16 %v541
    %v581 = vunpack.c.l.b16 %v542
    %v582 = vunpack.c.l.b16 %v543
    %v583 = vunpack.c.l.b16 %v544
    %v584 = vunpack.c.l.b16 %v545
    %v585 = vunpack.c.l.b16 %v546
    %v586 = vunpack.c.l.b16 %v547
    %v587 = vpack.c.b16 %v572, %v571
    %v588 = vpack.c.b16 %v574, %v573
    %v589 = vpack.c.b16 %v576, %v575
    %v590 = vpack.c.b16 %v578, %v577
    %v591 = vpack.c.b16 %v580, %v579
    %v592 = vpack.c.b16 %v582, %v581
    %v593 = vpack.c.b16 %v584, %v583
    %v594 = vpack.c.b16 %v586, %v585
    %603 = vmatprep.subr.bf16.mxu0 0
    %604 = vmatpush1.bf16.msra.mxu0 %v587
    %605 = vmatprep.subr.bf16.mxu0 0
    %606 = vmatpush1.bf16.msra.mxu0 %v588
    %607 = vmatprep.subr.bf16.mxu0 0
    %608 = vmatpush1.bf16.msra.mxu0 %v589
    %609 = vmatprep.subr.bf16.mxu0 0
    %610 = vmatpush1.bf16.msra.mxu0 %v590
    %611 = vmatprep.subr.bf16.mxu0 0
    %612 = vmatpush1.bf16.msra.mxu0 %v591
    %613 = vmatprep.subr.bf16.mxu0 0
    %614 = vmatpush1.bf16.msra.mxu0 %v592
    %615 = vmatprep.subr.bf16.mxu0 0
    %616 = vmatpush1.bf16.msra.mxu0 %v593
    %617 = vmatprep.subr.bf16.mxu0 0
    %618 = vmatpush1.bf16.msra.mxu0 %v594
    %619 = vmatprep.subr.bf16.mxu0 0
    %620 = vmatpush1.bf16.msra.mxu0 0
    %621 = vmatprep.subr.bf16.mxu0 0
    %622 = vmatpush1.bf16.msra.mxu0 0
    %623 = vmatprep.subr.bf16.mxu0 0
    %624 = vmatpush1.bf16.msra.mxu0 0
    %625 = vmatprep.subr.bf16.mxu0 0
    %626 = vmatpush1.bf16.msra.mxu0 0
    %627 = vmatprep.subr.bf16.mxu0 0
    %628 = vmatpush1.bf16.msra.mxu0 0
    %629 = vmatprep.subr.bf16.mxu0 0
    %630 = vmatpush1.bf16.msra.mxu0 0
    %631 = vmatprep.subr.bf16.mxu0 0
    %632 = vmatpush1.bf16.msra.mxu0 0
    %633 = vmatprep.subr.bf16.mxu0 0
    %634 = vmatpush1.bf16.msra.mxu0 0
    %635 = vmatprep.mubr.bf16.mxu0 0
    %636 = vmatmul.mubr.bf16.gmra.mrb[0].mxu0 %v531
    %v637 = vpop.f32.mrb[0].mxu0
    %v638 = vadd.f32 %v553, %v637
    %v639 = vpop.f32.mrb[0].mxu0
    %v640 = vpop.f32.mrb[0].mxu0
    %v641 = vadd.f32 %v553, %v640
    %v642 = vpop.f32.mrb[0].mxu0
    %643 = vdwg.mxu0
    %644 = vst [vmem:[#allocation8] sm:$0xff] %v638
    %645 = vst [vmem:[#allocation8 + $0x8] sm:$0xff] %v641
    // Predicated region
    $region34: #{tpu_custom_call.1} parent=1 // pred_check
      _
    $region35: #{tpu_custom_call.1} parent=1 // pred_check_branch
      %647 = sbr.rel (0) target = $region37
    $region36: #{tpu_custom_call.1} parent=1 // pred_region
      %s649 = ssub.s32 256, 256
      %650 = vsyncadd [#allocation4], %s649
      %s651 = sshll.u32 [#allocation8], 4
      %s652 = int_to_ptr.vmem [resolvable:$true] %s651
      %657 = dma.vmem_to_hbm [thread:$0]  %s652, 256, %s5, [#allocation4], 128, 128, 8
    $region37: #{tpu_custom_call.1} parent=1 // pred_fallthru
      _
    // Predicated region
    $region38: #{tpu_custom_call.1} parent=1 // pred_check
      _
    $region39: #{tpu_custom_call.1} parent=1 // pred_check_branch
      %659 = sbr.rel (0) target = $region41
    $region40: #{tpu_custom_call.1} parent=1 // pred_region
      %660 = dma.done [#allocation4], 256
    $region41: #{tpu_custom_call.1} parent=1 // pred_fallthru
      _
    %661 = vsyncpa [#allocation3], 1
    %662 = vsyncpa [#allocation6], 1
    %663 = vsyncpa [#allocation4], 1

</llo_original>
